<compile_context>
chip_gen: v7x
topology: tpu7x:2x2x1
jax: 0.10.0
libtpu: 0.0.40
codegen_flags: <defaults>
</compile_context>

<pallas_src>
import jax
import jax.numpy as jnp
from jax.experimental import pallas as pl
from jax.experimental.pallas import tpu as pltpu

BN_EPS = 1e-5
LANE = 128
# VMEM working-set budget used for tile / path selection (double-buffer worst
# case), kept well under v7x's 64 MiB physical VMEM.
VMEM_BUDGET = 48 * 1024 * 1024
VMEM_LIMIT = 56 * 1024 * 1024


def _round_up(x, m):
    return pl.cdiv(x, m) * m


def _bn_relu_epilogue(y, gamma, beta):
    """Training-mode BatchNorm1d + ReLU on a VMEM-resident (N, tn) f32 tile."""
    inv_n = 1.0 / y.shape[0]
    mean = jnp.sum(y, axis=0, keepdims=True) * inv_n
    yc = y - mean                                            # two-pass: no cancellation
    var = jnp.sum(yc * yc, axis=0, keepdims=True) * inv_n    # biased variance
    scale = gamma * jax.lax.rsqrt(var + BN_EPS)              # EUP rsqrt
    return jnp.maximum(yc * scale + beta, 0.0)


def _kernel_resident(x_ref, w_ref, gamma_ref, beta_ref, o_ref):
    """grid = (feature_tiles,). x is one full (N, K) block, VMEM-resident for all tiles."""
    y = jnp.dot(x_ref[...], w_ref[...], preferred_element_type=jnp.float32)
    o_ref[...] = _bn_relu_epilogue(y, gamma_ref[...], beta_ref[...]).astype(o_ref.dtype)


def _kernel_ktiled(x_ref, w_ref, gamma_ref, beta_ref, o_ref):
    """grid = (feature_tiles, k_tiles); K innermost; accumulate directly into o_ref (f32)."""
    k = pl.program_id(1)

    @pl.when(k == 0)
    def _init():
        o_ref[...] = jnp.zeros_like(o_ref)

    o_ref[...] += jnp.dot(x_ref[...], w_ref[...], preferred_element_type=jnp.float32)

    @pl.when(k == pl.num_programs(1) - 1)
    def _epilogue():
        o_ref[...] = _bn_relu_epilogue(
            o_ref[...], gamma_ref[...], beta_ref[...]
        ).astype(o_ref.dtype)


def make_linear_block(w, b, gamma, beta, *, tn_max=512, tk_max=512,
                      _force_ktiled=False):
    """Fused Linear -> BatchNorm1d(train) -> ReLU forward for fixed parameters.

    w: (size_out, size_in) nn.Linear weight; b: (size_out,) nn.Linear bias;
    gamma/beta: (size_out,) BatchNorm1d affine parameters.
    Returns a jitted callable: x (N, size_in) f32 -> (N, size_out) f32.
    """
    del b  # exactly cancelled by training-mode BN mean subtraction
    size_out, size_in = w.shape

    tn = min(tn_max, _round_up(size_out, LANE))
    f_pad = _round_up(size_out, tn)
    tk = min(tk_max, _round_up(size_in, LANE))
    k_pad = _round_up(size_in, tk)

    # --- one-time (init) padding of parameters; never done per call ---
    w_t = jnp.pad(w.T.astype(jnp.float32), ((0, 0), (0, f_pad - size_out)))
    w_t_kt = jnp.pad(w_t, ((0, k_pad - size_in), (0, 0)))      # K-padded copy
    gamma2 = jnp.pad(gamma.astype(jnp.float32).reshape(1, -1),
                     ((0, 0), (0, f_pad - size_out)))
    beta2 = jnp.pad(beta.astype(jnp.float32).reshape(1, -1),
                    ((0, 0), (0, f_pad - size_out)))

    @jax.jit
    def forward(x):
        n, k_in = x.shape
        assert k_in == size_in
        x = x.astype(jnp.float32)

        # Worst-case VMEM if x is kept fully resident (double-buffered estimate).
        resident_bytes = 4 * (2 * n * size_in + 2 * size_in * tn + 2 * n * tn)

        if resident_bytes <= VMEM_BUDGET and not _force_ktiled:
            # ---------- x-resident path: x DMA'd from HBM exactly once ----------
            out = pl.pallas_call(
                _kernel_resident,
                out_shape=jax.ShapeDtypeStruct((n, f_pad), jnp.float32),
                grid_spec=pltpu.PrefetchScalarGridSpec(
                    num_scalar_prefetch=0,
                    grid=(f_pad // tn,),
                    in_specs=[
                        pl.BlockSpec((n, size_in), lambda j: (0, 0)),  # resident
                        pl.BlockSpec((size_in, tn), lambda j: (0, j)),
                        pl.BlockSpec((1, tn), lambda j: (0, j)),
                        pl.BlockSpec((1, tn), lambda j: (0, j)),
                    ],
                    out_specs=pl.BlockSpec((n, tn), lambda j: (0, j)),
                ),
                compiler_params=pltpu.CompilerParams(
                    dimension_semantics=("parallel",),
                    vmem_limit_bytes=VMEM_LIMIT,
                ),
            )(x, w_t, gamma2, beta2)
        else:
            # ---------- K-tiled fallback for large N*K ----------
            if k_pad != size_in:
                # TODO(synk): pre-align size_in (or mask the K tail in-kernel)
                # to avoid this per-call pad of x on the fallback path.
                x_p = jnp.pad(x, ((0, 0), (0, k_pad - size_in)))
            else:
                x_p = x
            out = pl.pallas_call(
                _kernel_ktiled,
                out_shape=jax.ShapeDtypeStruct((n, f_pad), jnp.float32),
                grid_spec=pltpu.PrefetchScalarGridSpec(
                    num_scalar_prefetch=0,
                    grid=(f_pad // tn, k_pad // tk),
                    in_specs=[
                        pl.BlockSpec((n, tk), lambda j, k: (0, k)),
                        pl.BlockSpec((tk, tn), lambda j, k: (k, j)),
                        pl.BlockSpec((1, tn), lambda j, k: (0, j)),
                        pl.BlockSpec((1, tn), lambda j, k: (0, j)),
                    ],
                    out_specs=pl.BlockSpec((n, tn), lambda j, k: (0, j)),
                ),
                compiler_params=pltpu.CompilerParams(
                    # TODO(synk): consider pltpu.CORE_PARALLEL on axis 0 for
                    # explicit two-TensorCore sharding on v7x.
                    dimension_semantics=("parallel", "arbitrary"),
                    vmem_limit_bytes=VMEM_LIMIT,
                ),
            )(x_p, w_t_kt, gamma2, beta2)

        return out[:, :size_out]

    return forward


def reference(x, w_t, b, gamma, beta):
    y = x @ w_t + b
    mean = y.mean(axis=0, keepdims=True)
    var = ((y - mean) ** 2).mean(axis=0, keepdims=True)
    out = (y - mean) / jnp.sqrt(var + BN_EPS) * gamma + beta
    return jnp.maximum(out, 0.0)


if __name__ == "__main__":
    size_in, size_out, batch = 32, 16, 8

    key = jax.random.PRNGKey(0)
    kx, kw, kb = jax.random.split(key, 3)

    # Deterministic parameter init (mimics nn.Linear's uniform(-1/sqrt(fan_in), ...)).
    bound = 1.0 / (size_in ** 0.5)
    w = jax.random.uniform(kw, (size_out, size_in), jnp.float32, -bound, bound)
    b = jax.random.uniform(kb, (size_out,), jnp.float32, -bound, bound)
    gamma = jnp.ones((size_out,), jnp.float32)    # BatchNorm1d weight init
    beta = jnp.zeros((size_out,), jnp.float32)    # BatchNorm1d bias init

    x = jax.random.normal(kx, (batch, size_in), jnp.float32)
    ref = reference(x, w.T, b[None, :], gamma[None, :], beta[None, :])

    # x-resident (default) path.
    fwd = make_linear_block(w, b, gamma, beta)
    out = jax.block_until_ready(fwd(x))
    assert out.shape == (batch, size_out)
    assert jnp.allclose(out, ref, atol=1e-4, rtol=1e-4), "resident path mismatch"

    # Exercise the K-tiled fallback path as well.
    fwd_kt = make_linear_block(w, b, gamma, beta, _force_ktiled=True)
    out_kt = jax.block_until_ready(fwd_kt(x))
    assert jnp.allclose(out_kt, ref, atol=1e-4, rtol=1e-4), "k-tiled path mismatch"

    print("KERNEL_OK")
</pallas_src>

<mosaic_0001>
module attributes {stable_mosaic.version = 11 : i64} {
  func.func @_kernel_resident(%arg0: i32, %arg1: memref<8x32xf32, #tpu.memory_space<vmem>>, %arg2: memref<32x128xf32, #tpu.memory_space<vmem>>, %arg3: memref<1x128xf32, #tpu.memory_space<vmem>>, %arg4: memref<1x128xf32, #tpu.memory_space<vmem>>, %arg5: memref<8x128xf32, #tpu.memory_space<vmem>>) attributes {dimension_semantics = [#tpu.dimension_semantics<parallel>], iteration_bounds = array<i64: 1>, scalar_prefetch = 0 : i64, scratch_operands = 0 : i64, tpu.core_type = #tpu.core_type<tc>, window_params = [{pipeline_mode = #tpu.pipeline_mode<synchronous>, transform_indices = @transform_0, window_bounds = array<i64: 8, 32>}, {transform_indices = @transform_1, window_bounds = array<i64: 32, 128>}, {transform_indices = @transform_2, window_bounds = array<i64: 1, 128>}, {transform_indices = @transform_3, window_bounds = array<i64: 1, 128>}, {transform_indices = @transform_4, window_bounds = array<i64: 8, 128>}]} {
    %c0 = arith.constant 0 : index
    %c0_0 = arith.constant 0 : index
    %0 = vector.load %arg1[%c0, %c0_0] : memref<8x32xf32, #tpu.memory_space<vmem>>, vector<8x32xf32>
    %c0_1 = arith.constant 0 : index
    %c0_2 = arith.constant 0 : index
    %1 = vector.load %arg2[%c0_1, %c0_2] : memref<32x128xf32, #tpu.memory_space<vmem>>, vector<32x128xf32>
    %cst = arith.constant dense<0.000000e+00> : vector<8x128xf32>
    %2 = tpu.matmul %0, %1, %cst {dimension_numbers = #tpu.dot_dimension_numbers<[1], [0], [0], [1], [0, 0, 1, 1], [], []>} : vector<8x32xf32>, vector<32x128xf32>, vector<8x128xf32> -> vector<8x128xf32>
    %c0_3 = arith.constant 0 : index
    %c0_4 = arith.constant 0 : index
    %3 = vector.load %arg3[%c0_3, %c0_4] : memref<1x128xf32, #tpu.memory_space<vmem>>, vector<1x128xf32>
    %c0_5 = arith.constant 0 : index
    %c0_6 = arith.constant 0 : index
    %4 = vector.load %arg4[%c0_5, %c0_6] : memref<1x128xf32, #tpu.memory_space<vmem>>, vector<1x128xf32>
    %cst_7 = arith.constant dense<0.000000e+00> : vector<128xf32>
    %5 = vector.multi_reduction <add>, %2, %cst_7 [0] : vector<8x128xf32> to vector<128xf32>
    %6 = vector.shape_cast %5 : vector<128xf32> to vector<1x128xf32>
    %cst_8 = arith.constant 1.250000e-01 : f32
    %7 = vector.broadcast %cst_8 : f32 to vector<1x128xf32>
    %8 = arith.mulf %6, %7 : vector<1x128xf32>
    %9 = vector.broadcast %8 : vector<1x128xf32> to vector<8x128xf32>
    %10 = arith.subf %2, %9 : vector<8x128xf32>
    %11 = arith.mulf %10, %10 : vector<8x128xf32>
    %cst_9 = arith.constant dense<0.000000e+00> : vector<128xf32>
    %12 = vector.multi_reduction <add>, %11, %cst_9 [0] : vector<8x128xf32> to vector<128xf32>
    %13 = vector.shape_cast %12 : vector<128xf32> to vector<1x128xf32>
    %cst_10 = arith.constant 1.250000e-01 : f32
    %14 = vector.broadcast %cst_10 : f32 to vector<1x128xf32>
    %15 = arith.mulf %13, %14 : vector<1x128xf32>
    %cst_11 = arith.constant 9.99999974E-6 : f32
    %16 = vector.broadcast %cst_11 : f32 to vector<1x128xf32>
    %17 = arith.addf %15, %16 : vector<1x128xf32>
    %18 = math.rsqrt %17 : vector<1x128xf32>
    %19 = arith.mulf %3, %18 : vector<1x128xf32>
    %20 = vector.broadcast %19 : vector<1x128xf32> to vector<8x128xf32>
    %21 = arith.mulf %10, %20 : vector<8x128xf32>
    %22 = vector.broadcast %4 : vector<1x128xf32> to vector<8x128xf32>
    %23 = arith.addf %21, %22 : vector<8x128xf32>
    %cst_12 = arith.constant 0.000000e+00 : f32
    %24 = vector.broadcast %cst_12 : f32 to vector<8x128xf32>
    %25 = arith.maximumf %23, %24 : vector<8x128xf32>
    %c0_13 = arith.constant 0 : index
    %c0_14 = arith.constant 0 : index
    %26 = vector.load %arg5[%c0_13, %c0_14] : memref<8x128xf32, #tpu.memory_space<vmem>>, vector<8x128xf32>
    tpu.vector_store %arg5[%c0_13, %c0_14], %25 {strides = array<i32>} : memref<8x128xf32, #tpu.memory_space<vmem>>, vector<8x128xf32>,
    return
  }
  func.func @transform_0(%arg0: i32) -> (i32, i32) {
    %c0_i32 = arith.constant 0 : i32
    %c0_i32_0 = arith.constant 0 : i32
    %c0_i32_1 = arith.constant 0 : i32
    return %c0_i32, %c0_i32_0 : i32, i32
  }
  func.func @transform_1(%arg0: i32) -> (i32, i32) {
    %c0_i32 = arith.constant 0 : i32
    %c0_i32_0 = arith.constant 0 : i32
    return %c0_i32, %arg0 : i32, i32
  }
  func.func @transform_2(%arg0: i32) -> (i32, i32) {
    %c0_i32 = arith.constant 0 : i32
    %c0_i32_0 = arith.constant 0 : i32
    return %c0_i32, %arg0 : i32, i32
  }
  func.func @transform_3(%arg0: i32) -> (i32, i32) {
    %c0_i32 = arith.constant 0 : i32
    %c0_i32_0 = arith.constant 0 : i32
    return %c0_i32, %arg0 : i32, i32
  }
  func.func @transform_4(%arg0: i32) -> (i32, i32) {
    %c0_i32 = arith.constant 0 : i32
    %c0_i32_0 = arith.constant 0 : i32
    return %c0_i32, %arg0 : i32, i32
  }
}

</mosaic_0001>

<llo_original>
// kernel: forward.1
$region0: #{forward.1}
  #allocation0 [shape = 'u32[]', space=smem, size = 0x4, offset = 0x4, fixed_abs, tag = 'smem constant byte address 0x4 - core index']
  #allocation1 [shape = 'u32[144,128]{1,0:T(1,128)}', space=vmem, size = 0x12000, scoped, tag = 'internal scratch']
  %s0 = inlined_call_operand.hbm [shape: f32[8,32], index: 0, kind: input, shape index: {}]
  %s1 = inlined_call_operand.hbm [shape: f32[32,128], index: 1, kind: input, shape index: {}]
  %s2 = inlined_call_operand.vmem [shape: f32[1,128], index: 2, kind: input, shape index: {}]
  %s3 = inlined_call_operand.vmem [shape: f32[1,128], index: 3, kind: input, shape index: {}]
  %s4 = inlined_call_operand.hbm [shape: f32[8,128], index: 4, kind: output, shape index: {}]
  %s5 = sld [smem:[#allocation0]]
  $region34: #{forward.1} parent=0
    _
  %s7 = ssub.s32 1, %s5
  %s8 = scalar_select 0, %s7, %s5
  $region1: #{forward.1} parent=0
    #allocation2 [shape = 'u8[4096]{0}', space=vmem, size = 0x1000, scoped, tag = 'input window, operand 0, single buffered']
    #allocation3 [shape = 's32[1]{0}', space=sflag, size = 0x4, scoped, tag = 'scoped memory for forward.1']
    #allocation4 [shape = 's32[1]{0}', space=sflag, size = 0x4, scoped, tag = 'scoped memory for forward.1']
    #allocation5 [shape = 'u8[16384]{0}', space=vmem, size = 0x4000, scoped, tag = 'input window, operand 1, single buffered']
    #allocation6 [shape = 's32[1]{0}', space=sflag, size = 0x4, scoped, tag = 'scoped memory for forward.1']
    #allocation7 [shape = 'u8[4096]{0}', space=vmem, size = 0x1000, scoped, tag = 'output window, operand 0, single buffered']
    %9 = vsyncpa [#allocation3], 0
    %10 = vsyncpa [#allocation6], 0
    %11 = vsyncpa [#allocation4], 0
    // Predicated region
    $region2: #{forward.1} parent=1 // pred_check
      _
    $region3: #{forward.1} parent=1 // pred_check_branch
      %13 = sbr.rel (0) target = $region5
    $region4: #{forward.1} parent=1 // pred_region
      %s15 = ssub.s32 128, 128
      %16 = vsyncadd [#allocation3], %s15
      %s18 = sshll.u32 [#allocation2], 4
      %s19 = int_to_ptr.vmem [resolvable:$true] %s18
      %21 = dma.hbm_to_vmem [thread:$0]  %s0, 128, %s19, [#allocation3]
    $region5: #{forward.1} parent=1 // pred_fallthru
      _
    // Predicated region
    $region6: #{forward.1} parent=1 // pred_check
      _
    $region7: #{forward.1} parent=1 // pred_check_branch
      %23 = sbr.rel (0) target = $region9
    $region8: #{forward.1} parent=1 // pred_region
      %s25 = ssub.s32 512, 512
      %26 = vsyncadd [#allocation6], %s25
      %s27 = sshll.u32 [#allocation5], 4
      %s28 = int_to_ptr.vmem [resolvable:$true] %s27
      %33 = dma.hbm_to_vmem [thread:$0]  %s1, 512, %s28, [#allocation6], 128, 128, 8
    $region9: #{forward.1} parent=1 // pred_fallthru
      _
    // Predicated region
    $region10: #{forward.1} parent=1 // pred_check
      _
    $region11: #{forward.1} parent=1 // pred_check_branch
      %35 = sbr.rel (0) target = $region13
    $region12: #{forward.1} parent=1 // pred_region
      _
    $region13: #{forward.1} parent=1 // pred_fallthru
      _
    // Predicated region
    $region14: #{forward.1} parent=1 // pred_check
      _
    $region15: #{forward.1} parent=1 // pred_check_branch
      %37 = sbr.rel (0) target = $region17
    $region16: #{forward.1} parent=1 // pred_region
      _
    $region17: #{forward.1} parent=1 // pred_fallthru
      _
    // Predicated region
    $region18: #{forward.1} parent=1 // pred_check
      _
    $region19: #{forward.1} parent=1 // pred_check_branch
      %39 = sbr.rel (0) target = $region21
    $region20: #{forward.1} parent=1 // pred_region
      %40 = dma.done [#allocation3], 128
    $region21: #{forward.1} parent=1 // pred_fallthru
      _
    // Predicated region
    $region22: #{forward.1} parent=1 // pred_check
      _
    $region23: #{forward.1} parent=1 // pred_check_branch
      %42 = sbr.rel (0) target = $region25
    $region24: #{forward.1} parent=1 // pred_region
      %43 = dma.done [#allocation6], 512
    $region25: #{forward.1} parent=1 // pred_fallthru
      _
    %v44 = vld [vmem:[#allocation2] sm:$0xff]
    %v45 = vld [vmem:[#allocation5] sm:$0xff]
    %v46 = vld [vmem:[#allocation5 + $0x8] sm:$0xff]
    %v47 = vld [vmem:[#allocation5 + $0x10] sm:$0xff]
    %v48 = vld [vmem:[#allocation5 + $0x18] sm:$0xff]
    %vm49 = vcmask 261120
    %v51 = vsel %vm49, %v44, 0
    %53 = vmatprep.subr.mxu0 0.0
    %54 = vmatpush1.msra.mxu0 %v45
    %55 = vmatprep.subr.mxu0 0.0
    %56 = vmatpush1.msra.mxu0 %v46
    %57 = vmatprep.subr.mxu0 0.0
    %58 = vmatpush1.msra.mxu0 %v47
    %59 = vmatprep.subr.mxu0 0.0
    %60 = vmatpush1.msra.mxu0 %v48
    %61 = vmatprep.subr.mxu0 0.0
    %62 = vmatpush1.msra.mxu0 0.0
    %63 = vmatprep.subr.mxu0 0.0
    %64 = vmatpush1.msra.mxu0 0.0
    %65 = vmatprep.subr.mxu0 0.0
    %66 = vmatpush1.msra.mxu0 0.0
    %67 = vmatprep.subr.mxu0 0.0
    %68 = vmatpush1.msra.mxu0 0.0
    %69 = vmatprep.subr.mxu0 0.0
    %70 = vmatpush1.msra.mxu0 0.0
    %71 = vmatprep.subr.mxu0 0.0
    %72 = vmatpush1.msra.mxu0 0.0
    %73 = vmatprep.subr.mxu0 0.0
    %74 = vmatpush1.msra.mxu0 0.0
    %75 = vmatprep.subr.mxu0 0.0
    %76 = vmatpush1.msra.mxu0 0.0
    %77 = vmatprep.subr.mxu0 0.0
    %78 = vmatpush1.msra.mxu0 0.0
    %79 = vmatprep.subr.mxu0 0.0
    %80 = vmatpush1.msra.mxu0 0.0
    %81 = vmatprep.subr.mxu0 0.0
    %82 = vmatpush1.msra.mxu0 0.0
    %83 = vmatprep.subr.mxu0 0.0
    %84 = vmatpush1.msra.mxu0 0.0
    %85 = vmatprep.subr.mxu0 0.0
    %86 = vmatpush1.msra.mxu0 0.0
    %87 = vmatprep.subr.mxu0 0.0
    %88 = vmatpush1.msra.mxu0 0.0
    %89 = vmatprep.subr.mxu0 0.0
    %90 = vmatpush1.msra.mxu0 0.0
    %91 = vmatprep.subr.mxu0 0.0
    %92 = vmatpush1.msra.mxu0 0.0
    %93 = vmatprep.subr.mxu0 0.0
    %94 = vmatpush1.msra.mxu0 0.0
    %95 = vmatprep.subr.mxu0 0.0
    %96 = vmatpush1.msra.mxu0 0.0
    %97 = vmatprep.subr.mxu0 0.0
    %98 = vmatpush1.msra.mxu0 0.0
    %99 = vmatprep.subr.mxu0 0.0
    %100 = vmatpush1.msra.mxu0 0.0
    %101 = vmatprep.subr.mxu0 0.0
    %102 = vmatpush1.msra.mxu0 0.0
    %103 = vmatprep.subr.mxu0 0.0
    %104 = vmatpush1.msra.mxu0 0.0
    %105 = vmatprep.subr.mxu0 0.0
    %106 = vmatpush1.msra.mxu0 0.0
    %107 = vmatprep.subr.mxu0 0.0
    %108 = vmatpush1.msra.mxu0 0.0
    %109 = vmatprep.subr.mxu0 0.0
    %110 = vmatpush1.msra.mxu0 0.0
    %111 = vmatprep.subr.mxu0 0.0
    %112 = vmatpush1.msra.mxu0 0.0
    %113 = vmatprep.subr.mxu0 0.0
    %114 = vmatpush1.msra.mxu0 0.0
    %115 = vmatprep.subr.mxu0 0.0
    %116 = vmatpush1.msra.mxu0 0.0
    %117 = vmatprep.mubr.f32.mxu0 0.0
    %118 = vmatmul.mubr.f32.gmra.mrb[0].mxu0 %v51
    %v119 = vpop.f32.mrb[0].mxu0
    %v120 = vadd.f32 0.0, %v119
    %v121 = vpop.f32.mrb[0].mxu0
    %122 = vdwg.mxu0
    %v123 = vld [vmem:[%s2] sm:$0x1]
    %v124 = vld [vmem:[%s3] sm:$0x1]
    %v125 = vrot.slane %v120, 4
    %v126 = vadd.f32 %v120, %v125
    %v127 = vrot.slane %v126, 2
    %v128 = vadd.f32 %v126, %v127
    %v129 = vrot.slane %v128, 1
    %v130 = vadd.f32 %v128, %v129
    %v131 = vmul.f32 %v130, 0.125
    %v132 = vsub.f32 %v120, %v131
    %v133 = vmul.f32 %v132, %v132
    %v134 = vrot.slane %v133, 4
    %v135 = vadd.f32 %v133, %v134
    %v136 = vrot.slane %v135, 2
    %v137 = vadd.f32 %v135, %v136
    %v138 = vrot.slane %v137, 1
    %v139 = vadd.f32 %v137, %v138
    %v140 = vmul.f32 %v139, 0.125
    %v141 = vadd.f32 %v140, 1e-05
    %v142 = vrsqrt.pop %v141
    %v143 = vmul.f32 %v123, %v142
    %v145 = vlaneseq
    %v146 = vshrl.u32 %v145, 7
    %v147 = vsub.s32 0, %v146
    %v148 = vrot.slane %v143, %v147
    %v150 = vmul.f32 %v132, %v148
    %v152 = vlaneseq
    %v153 = vshrl.u32 %v152, 7
    %v154 = vsub.s32 0, %v153
    %v155 = vrot.slane %v124, %v154
    %v157 = vadd.f32 %v150, %v155
    %v158 = vmax.f32 %v157, 0.0
    %159 = vst [vmem:[#allocation7] sm:$0xff] %v158
    // Predicated region
    $region26: #{forward.1} parent=1 // pred_check
      _
    $region27: #{forward.1} parent=1 // pred_check_branch
      %161 = sbr.rel (0) target = $region29
    $region28: #{forward.1} parent=1 // pred_region
      %s163 = ssub.s32 128, 128
      %164 = vsyncadd [#allocation4], %s163
      %s166 = sshll.u32 [#allocation7], 4
      %s167 = int_to_ptr.vmem [resolvable:$true] %s166
      %169 = dma.vmem_to_hbm [thread:$0]  %s167, 128, %s4, [#allocation4]
    $region29: #{forward.1} parent=1 // pred_fallthru
      _
    // Predicated region
    $region30: #{forward.1} parent=1 // pred_check
      _
    $region31: #{forward.1} parent=1 // pred_check_branch
      %171 = sbr.rel (0) target = $region33
    $region32: #{forward.1} parent=1 // pred_region
      %172 = dma.done [#allocation4], 128
    $region33: #{forward.1} parent=1 // pred_fallthru
      _
    %173 = vsyncpa [#allocation3], 1
    %174 = vsyncpa [#allocation6], 1
    %175 = vsyncpa [#allocation4], 1

</llo_original>
